<compile_context>
chip_gen: v6e
topology: v6e:2x2x1
jax: 0.10.0
libtpu: 0.0.40
codegen_flags: <defaults>
</compile_context>

<pallas_src>
import functools

import jax
import jax.numpy as jnp
import numpy as np
from jax.experimental import pallas as pl
from jax.experimental.pallas import tpu as pltpu

LANES = 128
SUBLANES = 8
MAX_TILE_R = 1024  # 1024*128*4B = 512 KiB per f32 tile; ~3 MiB total with
                   # double-buffering -> fits default scoped VMEM on v5e/v6e/v7x.


def _round_up(x, m):
    return ((x + m - 1) // m) * m


# --------------------------------------------------------------------------
# Pass 1: BCE-with-logits + positive/negative masking + per-tile partials.
# --------------------------------------------------------------------------
def _bce_stats_kernel(pred_ref, gt_ref, mask_ref, negloss_ref, partial_ref):
    pred = pred_ref[...]                       # (TILE_R, 128) f32
    gt = gt_ref[...].astype(jnp.float32)       # bf16 -> f32 in-kernel
    mask = mask_ref[...].astype(jnp.float32)   # bf16 -> f32 in-kernel

    # torch's .byte() truncates toward zero for non-negative {0,1} maps.
    positive = jnp.floor(gt * mask)
    negative = jnp.floor((1.0 - gt) * mask)

    # binary_cross_entropy_with_logits, reduction='none' (stable form).
    loss = jnp.maximum(pred, 0.0) - pred * gt + jnp.log1p(jnp.exp(-jnp.abs(pred)))

    negloss_ref[...] = loss * negative

    # Per-lane (sublane-reduced) partials; cross-lane reduce happens once in
    # the wrapper on a tiny array.  Rows 3..7 are zero padding to keep the
    # partial block (8, 128)-aligned.
    lane_partials = jnp.concatenate(
        [jnp.sum(loss * positive, axis=0, keepdims=True),
         jnp.sum(positive, axis=0, keepdims=True),
         jnp.sum(negative, axis=0, keepdims=True),
         jnp.zeros((5, LANES), jnp.float32)],
        axis=0)                                # (8, 128)
    partial_ref[0] = lane_partials


# --------------------------------------------------------------------------
# Pass 2: masked sum of the largest `neg_cnt` sorted negative losses.
# The slab is sorted ASCENDING; the top-k are the elements with flat index
# >= threshold = P - neg_cnt.  Tiles entirely below the threshold are clamped
# away in the index_map (no DMA) and gated off with pl.when.
# --------------------------------------------------------------------------
def _topk_sum_kernel(thresh_ref, negsorted_ref, out_ref, acc_ref, *, tile_elems):
    i = pl.program_id(0)
    n = pl.num_programs(0)

    @pl.when(i == 0)
    def _():
        acc_ref[0] = 0.0

    threshold = thresh_ref[0]                  # int32: P - neg_cnt
    tile_start = i * tile_elems                # int32

    @pl.when(tile_start + tile_elems > threshold)
    def _():
        tile = negsorted_ref[...]              # (TILE_R, 128) f32
        r, c = tile.shape
        row = jax.lax.broadcasted_iota(jnp.int32, (r, c), 0)
        col = jax.lax.broadcasted_iota(jnp.int32, (r, c), 1)
        flat_idx = tile_start + row * c + col  # int32 global sorted index
        acc_ref[0] += jnp.sum(jnp.where(flat_idx >= threshold, tile, 0.0))

    @pl.when(i == n - 1)
    def _():
        out_ref[0, 0] = acc_ref[0]


# --------------------------------------------------------------------------
# Wrapper
# --------------------------------------------------------------------------
def balance_cross_entropy_loss(pred, gt, mask, negative_ratio=3.0, eps=1e-6,
                               max_tile_r=MAX_TILE_R):
    """pred: (N,1,H,W) logits, gt: (N,1,H,W) {0,1}, mask: (N,H,W) {0,1}."""
    N, C, H, W = pred.shape
    assert C == 1
    assert max_tile_r % SUBLANES == 0
    total = N * C * H * W

    # Lane-dense (R, 128) slab; R is a multiple of tile_r (itself a multiple
    # of 8).  Padded elements get mask == 0 (see invariant in the header).
    r_needed = -(-total // LANES)
    tile_r = min(max_tile_r, _round_up(r_needed, SUBLANES))
    R = _round_up(r_needed, tile_r)
    num_tiles = R // tile_r
    pad_total = R * LANES
    tile_elems = tile_r * LANES

    def to2d(x, dtype):
        xf = x.reshape(-1).astype(dtype)
        xf = jnp.pad(xf, (0, pad_total - total))
        return xf.reshape(R, LANES)

    pred2 = to2d(pred, jnp.float32)
    gt2 = to2d(gt, jnp.bfloat16)     # {0,1} -> exact in bf16
    mask2 = to2d(mask, jnp.bfloat16)  # (N,H,W) == flat order of (N,1,H,W)

    negloss, partials = pl.pallas_call(
        _bce_stats_kernel,
        out_shape=(
            jax.ShapeDtypeStruct((R, LANES), jnp.float32),
            jax.ShapeDtypeStruct((num_tiles, SUBLANES, LANES), jnp.float32),
        ),
        grid=(num_tiles,),
        in_specs=[
            pl.BlockSpec((tile_r, LANES), lambda i: (i, 0)),
            pl.BlockSpec((tile_r, LANES), lambda i: (i, 0)),
            pl.BlockSpec((tile_r, LANES), lambda i: (i, 0)),
        ],
        out_specs=(
            pl.BlockSpec((tile_r, LANES), lambda i: (i, 0)),
            pl.BlockSpec((1, SUBLANES, LANES), lambda i: (i, 0, 0)),
        ),
        compiler_params=pltpu.CompilerParams(
            dimension_semantics=("parallel",)),
        cost_estimate=pl.CostEstimate(
            flops=12 * pad_total,
            transcendentals=2 * pad_total,
            bytes_accessed=pad_total * 12 + num_tiles * SUBLANES * LANES * 4),
    )(pred2, gt2, mask2)

    # Tiny reductions over the per-tile / per-lane partials.
    pos_sum = jnp.sum(partials[:, 0, :])
    pos_cnt = jnp.sum(partials[:, 1, :])
    neg_total = jnp.sum(partials[:, 2, :])

    # negative_count = min(int(neg_total), int(pos_cnt * ratio)) -- integer.
    neg_cnt_i = jnp.minimum(neg_total,
                            jnp.floor(pos_cnt * negative_ratio)).astype(jnp.int32)

    # TODO(synk): exact dynamic-k selection still uses XLA's full sort; a
    # Pallas histogram/radix-select would remove this O(n log n) step.
    neg_sorted = jnp.sort(negloss.reshape(-1)).reshape(R, LANES)  # ascending

    threshold = (pad_total - neg_cnt_i).astype(jnp.int32).reshape(1)

    def _sorted_map(i, thresh_ref):
        # Clamp early (no-top-k) tiles onto the first needed block so their
        # DMA is skipped (block index unchanged between consecutive steps).
        first = jnp.minimum(thresh_ref[0] // tile_elems, num_tiles - 1)
        return (jnp.maximum(i, first), 0)

    topk = pl.pallas_call(
        functools.partial(_topk_sum_kernel, tile_elems=tile_elems),
        out_shape=jax.ShapeDtypeStruct((1, 1), jnp.float32),
        grid_spec=pltpu.PrefetchScalarGridSpec(
            num_scalar_prefetch=1,
            grid=(num_tiles,),
            in_specs=[pl.BlockSpec((tile_r, LANES), _sorted_map)],
            out_specs=pl.BlockSpec(memory_space=pltpu.SMEM),
            scratch_shapes=[pltpu.SMEM((1,), jnp.float32)],
        ),
        compiler_params=pltpu.CompilerParams(
            dimension_semantics=("arbitrary",)),
    )(threshold, neg_sorted)

    # Final scalar combine (matches torch: int counts in the denominator).
    pos_cnt_t = jnp.floor(pos_cnt)
    neg_cnt_f = neg_cnt_i.astype(jnp.float32)
    return (pos_sum + topk[0, 0]) / (pos_cnt_t + neg_cnt_f + eps)


# --------------------------------------------------------------------------
# Pure-JAX reference mirroring the PyTorch forward.
# --------------------------------------------------------------------------
def _reference(pred, gt, mask, negative_ratio=3.0, eps=1e-6):
    mask4 = mask[:, None, :, :]
    positive = jnp.floor(gt * mask4)
    negative = jnp.floor((1.0 - gt) * mask4)
    pos_cnt = jnp.sum(positive)
    neg_cnt = jnp.minimum(jnp.sum(negative), jnp.floor(pos_cnt * negative_ratio))
    loss = jnp.maximum(pred, 0.0) - pred * gt + jnp.log1p(jnp.exp(-jnp.abs(pred)))
    pos_loss_sum = jnp.sum(loss * positive)
    neg_sorted = jnp.sort((loss * negative).reshape(-1))[::-1]
    idx = jnp.arange(neg_sorted.shape[0], dtype=jnp.int32)
    topk = jnp.sum(jnp.where(idx < neg_cnt.astype(jnp.int32), neg_sorted, 0.0))
    return (pos_loss_sum + topk) / (jnp.floor(pos_cnt) + neg_cnt + eps)


if __name__ == "__main__":
    key = jax.random.PRNGKey(0)

    def make_inputs(k, N, H, W):
        k1, k2, k3 = jax.random.split(k, 3)
        pred = jax.random.normal(k1, (N, 1, H, W), dtype=jnp.float32)
        gt = jax.random.bernoulli(k2, 0.3, (N, 1, H, W)).astype(jnp.float32)
        mask = jax.random.bernoulli(k3, 0.8, (N, H, W)).astype(jnp.float32)
        return pred, gt, mask

    ka, kb = jax.random.split(key)

    # Small shape, single-tile path.
    pred, gt, mask = make_inputs(ka, 2, 16, 16)
    out = jax.block_until_ready(balance_cross_entropy_loss(pred, gt, mask))
    ref = jax.block_until_ready(_reference(pred, gt, mask))
    np.testing.assert_allclose(np.asarray(out), np.asarray(ref),
                               rtol=1e-5, atol=1e-5)

    # Larger shape with a small tile to exercise the multi-tile grid,
    # per-tile partial reduction and the clamped top-k index_map.
    pred, gt, mask = make_inputs(kb, 2, 64, 64)
    out = jax.block_until_ready(
        balance_cross_entropy_loss(pred, gt, mask, max_tile_r=16))
    ref = jax.block_until_ready(_reference(pred, gt, mask))
    np.testing.assert_allclose(np.asarray(out), np.asarray(ref),
                               rtol=1e-5, atol=1e-5)

    print("KERNEL_OK")
</pallas_src>

<mosaic_0001>
module attributes {stable_mosaic.version = 11 : i64} {
  func.func @_bce_stats_kernel(%arg0: i32, %arg1: memref<8x128xf32, #tpu.memory_space<vmem>>, %arg2: memref<8x128xbf16, #tpu.memory_space<vmem>>, %arg3: memref<8x128xbf16, #tpu.memory_space<vmem>>, %arg4: memref<8x128xf32, #tpu.memory_space<vmem>>, %arg5: memref<1x8x128xf32, #tpu.memory_space<vmem>>) attributes {dimension_semantics = [#tpu.dimension_semantics<parallel>], iteration_bounds = array<i64: 1>, scalar_prefetch = 0 : i64, scratch_operands = 0 : i64, tpu.core_type = #tpu.core_type<tc>, window_params = [{transform_indices = @transform_0, window_bounds = array<i64: 8, 128>}, {transform_indices = @transform_1, window_bounds = array<i64: 8, 128>}, {transform_indices = @transform_2, window_bounds = array<i64: 8, 128>}, {transform_indices = @transform_3, window_bounds = array<i64: 8, 128>}, {transform_indices = @transform_4, window_bounds = array<i64: 1, 8, 128>}]} {
    %c0 = arith.constant 0 : index
    %c0_0 = arith.constant 0 : index
    %0 = vector.load %arg1[%c0, %c0_0] : memref<8x128xf32, #tpu.memory_space<vmem>>, vector<8x128xf32>
    %c0_1 = arith.constant 0 : index
    %c0_2 = arith.constant 0 : index
    %1 = vector.load %arg2[%c0_1, %c0_2] : memref<8x128xbf16, #tpu.memory_space<vmem>>, vector<8x128xbf16>
    %2 = arith.extf %1 : vector<8x128xbf16> to vector<8x128xf32>
    %c0_3 = arith.constant 0 : index
    %c0_4 = arith.constant 0 : index
    %3 = vector.load %arg3[%c0_3, %c0_4] : memref<8x128xbf16, #tpu.memory_space<vmem>>, vector<8x128xbf16>
    %4 = arith.extf %3 : vector<8x128xbf16> to vector<8x128xf32>
    %5 = arith.mulf %2, %4 : vector<8x128xf32>
    %6 = math.floor %5 : vector<8x128xf32>
    %cst = arith.constant 1.000000e+00 : f32
    %7 = vector.broadcast %cst : f32 to vector<8x128xf32>
    %8 = arith.subf %7, %2 : vector<8x128xf32>
    %9 = arith.mulf %8, %4 : vector<8x128xf32>
    %10 = math.floor %9 : vector<8x128xf32>
    %cst_5 = arith.constant 0.000000e+00 : f32
    %11 = vector.broadcast %cst_5 : f32 to vector<8x128xf32>
    %12 = arith.maximumf %0, %11 : vector<8x128xf32>
    %13 = arith.mulf %0, %2 : vector<8x128xf32>
    %14 = arith.subf %12, %13 : vector<8x128xf32>
    %15 = math.absf %0 : vector<8x128xf32>
    %cst_6 = arith.constant 0.000000e+00 : f32
    %16 = vector.broadcast %cst_6 : f32 to vector<8x128xf32>
    %17 = arith.subf %16, %15 : vector<8x128xf32>
    %18 = math.exp %17 : vector<8x128xf32>
    %19 = math.log1p %18 : vector<8x128xf32>
    %20 = arith.addf %14, %19 : vector<8x128xf32>
    %21 = arith.mulf %20, %10 : vector<8x128xf32>
    %c0_7 = arith.constant 0 : index
    %c0_8 = arith.constant 0 : index
    %22 = vector.load %arg4[%c0_7, %c0_8] : memref<8x128xf32, #tpu.memory_space<vmem>>, vector<8x128xf32>
    tpu.vector_store %arg4[%c0_7, %c0_8], %21 {strides = array<i32>} : memref<8x128xf32, #tpu.memory_space<vmem>>, vector<8x128xf32>,
    %23 = arith.mulf %20, %6 : vector<8x128xf32>
    %cst_9 = arith.constant dense<0.000000e+00> : vector<128xf32>
    %24 = vector.multi_reduction <add>, %23, %cst_9 [0] : vector<8x128xf32> to vector<128xf32>
    %25 = vector.shape_cast %24 : vector<128xf32> to vector<1x128xf32>
    %cst_10 = arith.constant dense<0.000000e+00> : vector<128xf32>
    %26 = vector.multi_reduction <add>, %6, %cst_10 [0] : vector<8x128xf32> to vector<128xf32>
    %27 = vector.shape_cast %26 : vector<128xf32> to vector<1x128xf32>
    %cst_11 = arith.constant dense<0.000000e+00> : vector<128xf32>
    %28 = vector.multi_reduction <add>, %10, %cst_11 [0] : vector<8x128xf32> to vector<128xf32>
    %29 = vector.shape_cast %28 : vector<128xf32> to vector<1x128xf32>
    %cst_12 = arith.constant 0.000000e+00 : f32
    %30 = vector.broadcast %cst_12 : f32 to vector<5x128xf32>
    %31 = tpu.concatenate %25, %27, %29, %30 in 0 : vector<1x128xf32>, vector<1x128xf32>, vector<1x128xf32>, vector<5x128xf32> -> vector<8x128xf32>
    %c0_13 = arith.constant 0 : index
    %c0_14 = arith.constant 0 : index
    %c0_15 = arith.constant 0 : index
    %32 = vector.load %arg5[%c0_13, %c0_14, %c0_15] : memref<1x8x128xf32, #tpu.memory_space<vmem>>, vector<1x8x128xf32>
    %33 = vector.shape_cast %32 : vector<1x8x128xf32> to vector<8x128xf32>
    %34 = vector.shape_cast %31 : vector<8x128xf32> to vector<1x8x128xf32>
    tpu.vector_store %arg5[%c0_13, %c0_14, %c0_15], %34 {strides = array<i32>} : memref<1x8x128xf32, #tpu.memory_space<vmem>>, vector<1x8x128xf32>,
    return
  }
  func.func @transform_0(%arg0: i32) -> (i32, i32) {
    %c0_i32 = arith.constant 0 : i32
    %c0_i32_0 = arith.constant 0 : i32
    return %arg0, %c0_i32 : i32, i32
  }
  func.func @transform_1(%arg0: i32) -> (i32, i32) {
    %c0_i32 = arith.constant 0 : i32
    %c0_i32_0 = arith.constant 0 : i32
    return %arg0, %c0_i32 : i32, i32
  }
  func.func @transform_2(%arg0: i32) -> (i32, i32) {
    %c0_i32 = arith.constant 0 : i32
    %c0_i32_0 = arith.constant 0 : i32
    return %arg0, %c0_i32 : i32, i32
  }
  func.func @transform_3(%arg0: i32) -> (i32, i32) {
    %c0_i32 = arith.constant 0 : i32
    %c0_i32_0 = arith.constant 0 : i32
    return %arg0, %c0_i32 : i32, i32
  }
  func.func @transform_4(%arg0: i32) -> (i32, i32, i32) {
    %c0_i32 = arith.constant 0 : i32
    %c0_i32_0 = arith.constant 0 : i32
    %c0_i32_1 = arith.constant 0 : i32
    return %arg0, %c0_i32, %c0_i32_0 : i32, i32, i32
  }
}

</mosaic_0001>

<llo_original>
// kernel: tpu_custom_call.1
$region0: #{tpu_custom_call.1}
  #allocation0 [shape = 'u32[]', space=smem, size = 0x4, offset = 0x4, fixed_abs, tag = 'smem constant byte address 0x4 - core index']
  #allocation1 [shape = 'u32[144,128]{1,0:T(1,128)}', space=vmem, size = 0x12000, scoped, tag = 'internal scratch']
  %s0 = inlined_call_operand.hbm [shape: f32[8,128], index: 0, kind: input, shape index: {}]
  %s1 = inlined_call_operand.hbm [shape: bf16[8,128], index: 1, kind: input, shape index: {}]
  %s2 = inlined_call_operand.hbm [shape: bf16[8,128], index: 2, kind: input, shape index: {}]
  %s3 = inlined_call_operand.hbm [shape: f32[8,128], index: 3, kind: output, shape index: {0}]
  %s4 = inlined_call_operand.hbm [shape: f32[1,8,128], index: 4, kind: output, shape index: {1}]
  %5 = xla_tuple %s3, %s4
  %s6 = sld [smem:[#allocation0]]
  $region42: #{tpu_custom_call.1} parent=0
    _
  %s8 = ssub.s32 1, %s6
  %s9 = scalar_select 0, %s8, %s6
  $region1: #{tpu_custom_call.1} parent=0
    #allocation2 [shape = 'u8[4096]{0}', space=vmem, size = 0x1000, scoped, tag = 'input window, operand 0, single buffered']
    #allocation3 [shape = 's32[1]{0}', space=sflag, size = 0x4, scoped, tag = 'scoped memory for tpu_custom_call.1']
    #allocation4 [shape = 's32[1]{0}', space=sflag, size = 0x4, scoped, tag = 'scoped memory for tpu_custom_call.1']
    #allocation5 [shape = 'u8[2048]{0}', space=vmem, size = 0x800, scoped, tag = 'input window, operand 1, single buffered']
    #allocation6 [shape = 's32[1]{0}', space=sflag, size = 0x4, scoped, tag = 'scoped memory for tpu_custom_call.1']
    #allocation7 [shape = 'u8[2048]{0}', space=vmem, size = 0x800, scoped, tag = 'input window, operand 2, single buffered']
    #allocation8 [shape = 'u8[4096]{0}', space=vmem, size = 0x1000, scoped, tag = 'output window, operand 0, single buffered']
    #allocation9 [shape = 'u8[4096]{0}', space=vmem, size = 0x1000, scoped, tag = 'output window, operand 1, single buffered']
    #allocation10 [shape = 's32[1]{0}', space=sflag, size = 0x4, scoped, tag = 'scoped memory for tpu_custom_call.1']
    %10 = vsyncpa [#allocation3], 0
    %11 = vsyncpa [#allocation6], 0
    %12 = vsyncpa [#allocation4], 0
    %13 = vsyncpa [#allocation10], 0
    // Predicated region
    $region2: #{tpu_custom_call.1} parent=1 // pred_check
      _
    $region3: #{tpu_custom_call.1} parent=1 // pred_check_branch
      %15 = sbr.rel (0) target = $region5
    $region4: #{tpu_custom_call.1} parent=1 // pred_region
      %s17 = ssub.s32 128, 128
      %18 = vsyncadd [#allocation3], %s17
      %s20 = sshll.u32 [#allocation2], 4
      %s21 = int_to_ptr.vmem [resolvable:$true] %s20
      %23 = dma.hbm_to_vmem [thread:$0]  %s0, 128, %s21, [#allocation3]
    $region5: #{tpu_custom_call.1} parent=1 // pred_fallthru
      _
    // Predicated region
    $region6: #{tpu_custom_call.1} parent=1 // pred_check
      _
    $region7: #{tpu_custom_call.1} parent=1 // pred_check_branch
      %25 = sbr.rel (0) target = $region9
    $region8: #{tpu_custom_call.1} parent=1 // pred_region
      %s27 = ssub.s32 64, 64
      %28 = vsyncadd [#allocation6], %s27
      %s30 = sshll.u32 [#allocation5], 4
      %s31 = int_to_ptr.vmem [resolvable:$true] %s30
      %33 = dma.hbm_to_vmem [thread:$0]  %s1, 64, %s31, [#allocation6]
    $region9: #{tpu_custom_call.1} parent=1 // pred_fallthru
      _
    // Predicated region
    $region10: #{tpu_custom_call.1} parent=1 // pred_check
      _
    $region11: #{tpu_custom_call.1} parent=1 // pred_check_branch
      %35 = sbr.rel (0) target = $region13
    $region12: #{tpu_custom_call.1} parent=1 // pred_region
      %s37 = ssub.s32 64, 64
      %38 = vsyncadd [#allocation6], %s37
      %s40 = sshll.u32 [#allocation7], 4
      %s41 = int_to_ptr.vmem [resolvable:$true] %s40
      %43 = dma.hbm_to_vmem [thread:$0]  %s2, 64, %s41, [#allocation6]
    $region13: #{tpu_custom_call.1} parent=1 // pred_fallthru
      _
    // Predicated region
    $region14: #{tpu_custom_call.1} parent=1 // pred_check
      _
    $region15: #{tpu_custom_call.1} parent=1 // pred_check_branch
      %45 = sbr.rel (0) target = $region17
    $region16: #{tpu_custom_call.1} parent=1 // pred_region
      %46 = dma.done [#allocation3], 128
    $region17: #{tpu_custom_call.1} parent=1 // pred_fallthru
      _
    // Predicated region
    $region18: #{tpu_custom_call.1} parent=1 // pred_check
      _
    $region19: #{tpu_custom_call.1} parent=1 // pred_check_branch
      %48 = sbr.rel (0) target = $region21
    $region20: #{tpu_custom_call.1} parent=1 // pred_region
      %49 = dma.done [#allocation6], 64
    $region21: #{tpu_custom_call.1} parent=1 // pred_fallthru
      _
    // Predicated region
    $region22: #{tpu_custom_call.1} parent=1 // pred_check
      _
    $region23: #{tpu_custom_call.1} parent=1 // pred_check_branch
      %51 = sbr.rel (0) target = $region25
    $region24: #{tpu_custom_call.1} parent=1 // pred_region
      %52 = dma.done [#allocation6], 64
    $region25: #{tpu_custom_call.1} parent=1 // pred_fallthru
      _
    %v53 = vld [vmem:[#allocation2] sm:$0xff]
    %v54 = vld [vmem:[#allocation5] sm:$0xf]
    %v55 = vunpack.c.l.bf16 %v54
    %v56 = vld [vmem:[#allocation7] sm:$0xf]
    %v57 = vunpack.c.l.bf16 %v56
    %v58 = vmul.f32 %v55, %v57
    %v59 = vfloor.f32 %v58
    %v60 = vsub.f32 1.0, %v55
    %v61 = vmul.f32 %v60, %v57
    %v62 = vfloor.f32 %v61
    %v63 = vmax.f32 %v53, 0.0
    %v64 = vmul.f32 %v53, %v55
    %v65 = vsub.f32 %v63, %v64
    %v66 = vand.u32 2147483647, %v53
    %v67 = vsub.f32 0.0, %v66
    %v68 = vmul.f32 %v67, 1.442695
    %v69 = vpow.pop %v68
    %v70 = vadd.f32 %v69, 1.0
    %v71 = vlog2.pop %v70
    %v72 = vmul.f32 %v71, 0.6931472
    %v73 = vmul.f32 -0.5, %v69
    %v74 = vadd.f32 %v73, 1.0
    %v75 = vmul.f32 %v74, %v69
    %v76 = vand.u32 2147483647, %v69
    %vm77 = vcmp.lt.f32.partialorder %v76, 0.0004427343
    %v78 = vsel %vm77, %v75, %v72
    %v79 = vadd.f32 %v65, %v78
    %v80 = vmul.f32 %v79, %v62
    %81 = vst [vmem:[#allocation8] sm:$0xff] %v80
    %v82 = vmul.f32 %v79, %v59
    %v83 = vrot.slane %v82, 4
    %v84 = vadd.f32 %v82, %v83
    %v85 = vrot.slane %v84, 2
    %v86 = vadd.f32 %v84, %v85
    %v87 = vrot.slane %v86, 1
    %v88 = vadd.f32 %v86, %v87
    %v89 = vrot.slane %v59, 4
    %v90 = vadd.f32 %v59, %v89
    %v91 = vrot.slane %v90, 2
    %v92 = vadd.f32 %v90, %v91
    %v93 = vrot.slane %v92, 1
    %v94 = vadd.f32 %v92, %v93
    %v95 = vrot.slane %v62, 4
    %v96 = vadd.f32 %v62, %v95
    %v97 = vrot.slane %v96, 2
    %v98 = vadd.f32 %v96, %v97
    %v99 = vrot.slane %v98, 1
    %v100 = vadd.f32 %v98, %v99
    %vm101 = vcmask 1040384
    %v102 = vsel %vm101, %v88, %v94
    %vm103 = vcmask 1041408
    %v104 = vsel %vm103, %v102, %v100
    %vm105 = vcmask 1042432
    %v106 = vsel %vm105, %v104, 0.0
    %107 = vst [vmem:[#allocation9] sm:$0xff] %v106
    // Predicated region
    $region26: #{tpu_custom_call.1} parent=1 // pred_check
      _
    $region27: #{tpu_custom_call.1} parent=1 // pred_check_branch
      %109 = sbr.rel (0) target = $region29
    $region28: #{tpu_custom_call.1} parent=1 // pred_region
      %s111 = ssub.s32 128, 128
      %112 = vsyncadd [#allocation4], %s111
      %s114 = sshll.u32 [#allocation8], 4
      %s115 = int_to_ptr.vmem [resolvable:$true] %s114
      %117 = dma.vmem_to_hbm [thread:$0]  %s115, 128, %s3, [#allocation4]
    $region29: #{tpu_custom_call.1} parent=1 // pred_fallthru
      _
    // Predicated region
    $region30: #{tpu_custom_call.1} parent=1 // pred_check
      _
    $region31: #{tpu_custom_call.1} parent=1 // pred_check_branch
      %119 = sbr.rel (0) target = $region33
    $region32: #{tpu_custom_call.1} parent=1 // pred_region
      %s121 = ssub.s32 128, 128
      %122 = vsyncadd [#allocation10], %s121
      %s124 = sshll.u32 [#allocation9], 4
      %s125 = int_to_ptr.vmem [resolvable:$true] %s124
      %127 = dma.vmem_to_hbm [thread:$0]  %s125, 128, %s4, [#allocation10]
    $region33: #{tpu_custom_call.1} parent=1 // pred_fallthru
      _
    // Predicated region
    $region34: #{tpu_custom_call.1} parent=1 // pred_check
      _
    $region35: #{tpu_custom_call.1} parent=1 // pred_check_branch
      %129 = sbr.rel (0) target = $region37
    $region36: #{tpu_custom_call.1} parent=1 // pred_region
      %130 = dma.done [#allocation4], 128
    $region37: #{tpu_custom_call.1} parent=1 // pred_fallthru
      _
    // Predicated region
    $region38: #{tpu_custom_call.1} parent=1 // pred_check
      _
    $region39: #{tpu_custom_call.1} parent=1 // pred_check_branch
      %132 = sbr.rel (0) target = $region41
    $region40: #{tpu_custom_call.1} parent=1 // pred_region
      %133 = dma.done [#allocation10], 128
    $region41: #{tpu_custom_call.1} parent=1 // pred_fallthru
      _
    %134 = vsyncpa [#allocation3], 1
    %135 = vsyncpa [#allocation6], 1
    %136 = vsyncpa [#allocation4], 1
    %137 = vsyncpa [#allocation10], 1

</llo_original>
